<compile_context>
chip_gen: v6e
topology: v6e:2x2x1
jax: 0.10.0
libtpu: 0.0.40
codegen_flags: <defaults>
</compile_context>

<pallas_src>
import jax
import jax.numpy as jnp
from jax.experimental import pallas as pl
from jax.experimental.pallas import tpu as pltpu


def last_layer_kernel(x_ref, w1_ref, o_ref):
    # x_ref: (Bt, S, D) native dtype; w1_ref: (1, D); o_ref: (Bt, D)
    Bt, S, D = x_ref.shape
    x = x_ref[...]                                # native dtype, no f32 slab copy up front
    w1 = w1_ref[...]                              # (1, D)

    # Static (trace-time) shape gate: MXU path only for >=128-class S and D.
    use_mxu = (S >= 128) and (D >= 128)

    if use_mxu:
        # One flattened 2-D matmul: w1 pushed to the MXU once, full 8-sublane LHS use.
        x2 = x.reshape(Bt * S, D)
        s = jax.lax.dot_general(
            x2, w1.astype(x.dtype),
            dimension_numbers=(((1,), (1,)), ((), ())),
            preferred_element_type=jnp.float32).reshape(Bt, S)
    else:
        # Small-D path: VPU multiply + lane reduce over D (hidden under block DMA).
        s = jnp.sum((x * w1.astype(x.dtype).reshape(1, 1, D)).astype(jnp.float32),
                    axis=-1)                                        # (Bt, S) f32

    s = jnp.maximum(s, 0.0)                                         # ReLU

    # Numerically stable softmax over S (lane axis); exact divide for parity.
    m = jnp.max(s, axis=-1, keepdims=True)                          # (Bt, 1)
    e = jnp.exp(s - m)                                              # (Bt, S)
    p = e / jnp.sum(e, axis=-1, keepdims=True)                      # (Bt, S) f32

    if use_mxu:
        # Batched MXU contraction over S (acceptable when S, D are 128-class).
        cf = jnp.einsum("bk,bkd->bd", p.astype(x.dtype), x,
                        preferred_element_type=jnp.float32)         # (Bt, D) f32
    else:
        # Small-S path: VPU multiply (p broadcast across D lanes) + sublane reduce
        # over S, accumulated in f32 with p kept in f32.
        cf = jnp.sum(x.astype(jnp.float32) * p[:, :, None], axis=1)  # (Bt, D) f32

    o_ref[...] = cf.astype(o_ref.dtype)


_MIN_GRID_STEPS = 4


def _vmem_capacity_bytes():
    try:
        return int(pltpu.get_tpu_info().vmem_capacity_bytes)
    except Exception:
        return 64 * 1024 * 1024      # conservative (v7x-sized) fallback


def _pick_batch_block(B, S, D, itemsize, input_budget_bytes,
                      min_steps=_MIN_GRID_STEPS):
    """Pick the per-step batch block Bt such that
       * the double-buffered x slab fits input_budget_bytes,
       * the grid has >= min_steps steps when B permits (pipelining / dual-TC),
       * the (Bt, D) output block is layout-legal (Bt % 8 == 0 or Bt == B)."""
    per_batch = 2 * S * D * itemsize              # x is double-buffered by the pipeline
    bt_budget = max(1, input_budget_bytes // per_batch)
    bt_steps = max(1, B // min_steps)             # keep the pipeline / both TCs busy
    bt = min(bt_budget, bt_steps, B)
    if bt >= B:
        return B
    bt = (bt // 8) * 8
    while bt >= 8:
        if B % bt == 0:
            return bt
        bt -= 8
    if B % 8 == 0:
        return 8                                  # smallest legal sub-block
    # TODO(synk): awkward B / very large S*D needs the S-streaming online-softmax
    # variant; fall back to the whole batch (may exceed the per-step budget).
    return B


def last_layer_forward(x, w1_weight, *, batch_block=None):
    """x: (B, S, D); w1_weight: (1, D) as in nn.Linear(d_model, 1).weight -> (B, D)."""
    B, S, D = x.shape
    vmem_cap = _vmem_capacity_bytes()
    if batch_block is None:
        batch_block = _pick_batch_block(B, S, D, x.dtype.itemsize,
                                        input_budget_bytes=int(vmem_cap * 0.40))
    assert B % batch_block == 0

    # VMEM actually needed: double-buffered x block + double-buffered out block
    # + f32 intermediates + margin; never request beyond physical minus headroom.
    needed = (2 * batch_block * S * D * x.dtype.itemsize
              + 2 * batch_block * D * x.dtype.itemsize
              + 4 * batch_block * (S * D + 2 * S + D)
              + (1 << 20))
    vmem_limit = min(vmem_cap - (4 << 20), max(int(vmem_cap * 0.80), needed))

    # Advisory cost hint: tells XLA this custom call is memory-bound.
    cost = pl.CostEstimate(
        flops=4 * B * S * D,
        transcendentals=B * S,
        bytes_accessed=(B * S * D + B * D) * x.dtype.itemsize
                       + D * w1_weight.dtype.itemsize,
    )

    return pl.pallas_call(
        last_layer_kernel,
        out_shape=jax.ShapeDtypeStruct((B, D), x.dtype),
        grid_spec=pltpu.PrefetchScalarGridSpec(
            num_scalar_prefetch=0,
            grid=(B // batch_block,),
            in_specs=[
                pl.BlockSpec((batch_block, S, D), lambda b: (b, 0, 0)),  # batch slab
                pl.BlockSpec((1, D), lambda b: (0, 0)),                  # shared weight
            ],
            out_specs=pl.BlockSpec((batch_block, D), lambda b: (b, 0)),
        ),
        compiler_params=pltpu.CompilerParams(
            dimension_semantics=("parallel",),       # megacore / v7x dual-TC
            vmem_limit_bytes=vmem_limit,
        ),
        cost_estimate=cost,
    )(x, w1_weight)


def reference_forward(x, w1_weight):
    # Pure-JAX reference of the PyTorch forward (eval mode).
    s = jnp.maximum(jnp.einsum("bsd,od->bso", x, w1_weight), 0.0)   # (B, S, 1)
    p = jax.nn.softmax(s[..., 0], axis=-1)                          # (B, S)
    return jnp.sum(x * p[..., None], axis=1)                        # (B, D)


if __name__ == "__main__":
    B, S, D = 2, 8, 32  # batch, atoms (seq), d_model

    key = jax.random.PRNGKey(0)
    kx, kw = jax.random.split(key)
    x = jax.random.normal(kx, (B, S, D), dtype=jnp.float32)

    # Deterministic param init matching nn.Linear(d_model, 1, bias=False):
    # weight shape (1, d_model), uniform(-1/sqrt(d_model), 1/sqrt(d_model)).
    bound = 1.0 / (D ** 0.5)
    w1_weight = jax.random.uniform(kw, (1, D), dtype=jnp.float32,
                                   minval=-bound, maxval=bound)

    out = jax.block_until_ready(last_layer_forward(x, w1_weight))
    ref = reference_forward(x, w1_weight)

    assert out.shape == (B, D)
    assert jnp.allclose(out, ref, atol=1e-4, rtol=1e-4), float(
        jnp.max(jnp.abs(out - ref)))

    print("KERNEL_OK")
</pallas_src>

<mosaic_0001>
module attributes {stable_mosaic.version = 11 : i64} {
  func.func @last_layer_kernel(%arg0: i32, %arg1: memref<2x8x32xf32, #tpu.memory_space<vmem>>, %arg2: memref<1x32xf32, #tpu.memory_space<vmem>>, %arg3: memref<2x32xf32, #tpu.memory_space<vmem>>) attributes {dimension_semantics = [#tpu.dimension_semantics<parallel>], iteration_bounds = array<i64: 1>, scalar_prefetch = 0 : i64, scratch_operands = 0 : i64, tpu.core_type = #tpu.core_type<tc>, window_params = [{transform_indices = @transform_0, window_bounds = array<i64: 2, 8, 32>}, {pipeline_mode = #tpu.pipeline_mode<synchronous>, transform_indices = @transform_1, window_bounds = array<i64: 1, 32>}, {transform_indices = @transform_2, window_bounds = array<i64: 2, 32>}]} {
    %c0 = arith.constant 0 : index
    %c0_0 = arith.constant 0 : index
    %c0_1 = arith.constant 0 : index
    %0 = vector.load %arg1[%c0, %c0_0, %c0_1] : memref<2x8x32xf32, #tpu.memory_space<vmem>>, vector<2x8x32xf32>
    %c0_2 = arith.constant 0 : index
    %c0_3 = arith.constant 0 : index
    %1 = vector.load %arg2[%c0_2, %c0_3] : memref<1x32xf32, #tpu.memory_space<vmem>>, vector<1x32xf32>
    %2 = vector.shape_cast %1 : vector<1x32xf32> to vector<1x1x32xf32>
    %3 = vector.broadcast %2 : vector<1x1x32xf32> to vector<2x8x32xf32>
    %4 = arith.mulf %0, %3 : vector<2x8x32xf32>
    %cst = arith.constant dense<0.000000e+00> : vector<2x8xf32>
    %5 = vector.multi_reduction <add>, %4, %cst [2] : vector<2x8x32xf32> to vector<2x8xf32>
    %cst_4 = arith.constant 0.000000e+00 : f32
    %6 = vector.broadcast %cst_4 : f32 to vector<2x8xf32>
    %7 = arith.maximumf %5, %6 : vector<2x8xf32>
    %cst_5 = arith.constant dense<0xFF800000> : vector<2xf32>
    %8 = vector.multi_reduction <maximumf>, %7, %cst_5 [1] : vector<2x8xf32> to vector<2xf32>
    %9 = vector.shape_cast %8 : vector<2xf32> to vector<2x1xf32>
    %10 = vector.broadcast %9 : vector<2x1xf32> to vector<2x8xf32>
    %11 = arith.subf %7, %10 : vector<2x8xf32>
    %12 = math.exp %11 : vector<2x8xf32>
    %cst_6 = arith.constant dense<0.000000e+00> : vector<2xf32>
    %13 = vector.multi_reduction <add>, %12, %cst_6 [1] : vector<2x8xf32> to vector<2xf32>
    %14 = vector.shape_cast %13 : vector<2xf32> to vector<2x1xf32>
    %15 = vector.broadcast %14 : vector<2x1xf32> to vector<2x8xf32>
    %16 = arith.divf %12, %15 : vector<2x8xf32>
    %17 = vector.shape_cast %16 : vector<2x8xf32> to vector<2x8x1xf32>
    %18 = vector.broadcast %17 : vector<2x8x1xf32> to vector<2x8x32xf32>
    %19 = arith.mulf %0, %18 : vector<2x8x32xf32>
    %cst_7 = arith.constant dense<0.000000e+00> : vector<2x32xf32>
    %20 = vector.multi_reduction <add>, %19, %cst_7 [1] : vector<2x8x32xf32> to vector<2x32xf32>
    %c0_8 = arith.constant 0 : index
    %c0_9 = arith.constant 0 : index
    %21 = vector.load %arg3[%c0_8, %c0_9] : memref<2x32xf32, #tpu.memory_space<vmem>>, vector<2x32xf32>
    tpu.vector_store %arg3[%c0_8, %c0_9], %20 {strides = array<i32>} : memref<2x32xf32, #tpu.memory_space<vmem>>, vector<2x32xf32>,
    return
  }
  func.func @transform_0(%arg0: i32) -> (i32, i32, i32) {
    %c0_i32 = arith.constant 0 : i32
    %c0_i32_0 = arith.constant 0 : i32
    %c0_i32_1 = arith.constant 0 : i32
    return %arg0, %c0_i32, %c0_i32_0 : i32, i32, i32
  }
  func.func @transform_1(%arg0: i32) -> (i32, i32) {
    %c0_i32 = arith.constant 0 : i32
    %c0_i32_0 = arith.constant 0 : i32
    %c0_i32_1 = arith.constant 0 : i32
    return %c0_i32, %c0_i32_0 : i32, i32
  }
  func.func @transform_2(%arg0: i32) -> (i32, i32) {
    %c0_i32 = arith.constant 0 : i32
    %c0_i32_0 = arith.constant 0 : i32
    return %arg0, %c0_i32 : i32, i32
  }
}

</mosaic_0001>

<llo_original>
// kernel: tpu_custom_call.1
$region0: #{tpu_custom_call.1}
  #allocation0 [shape = 'u32[]', space=smem, size = 0x4, offset = 0x4, fixed_abs, tag = 'smem constant byte address 0x4 - core index']
  #allocation1 [shape = 'u32[144,128]{1,0:T(1,128)}', space=vmem, size = 0x12000, scoped, tag = 'internal scratch']
  %s0 = inlined_call_operand.hbm [shape: f32[2,8,32], index: 0, kind: input, shape index: {}]
  %s1 = inlined_call_operand.vmem [shape: f32[1,32], index: 1, kind: input, shape index: {}]
  %s2 = inlined_call_operand.hbm [shape: f32[2,32], index: 2, kind: output, shape index: {}]
  %s3 = sld [smem:[#allocation0]]
  $region22: #{tpu_custom_call.1} parent=0
    _
  %s5 = ssub.s32 1, %s3
  %s6 = scalar_select 0, %s5, %s3
  $region1: #{tpu_custom_call.1} parent=0
    #allocation2 [shape = 'u8[8192]{0}', space=vmem, size = 0x2000, scoped, tag = 'input window, operand 0, single buffered']
    #allocation3 [shape = 's32[1]{0}', space=sflag, size = 0x4, scoped, tag = 'scoped memory for tpu_custom_call.1']
    #allocation4 [shape = 's32[1]{0}', space=sflag, size = 0x4, scoped, tag = 'scoped memory for tpu_custom_call.1']
    #allocation5 [shape = 'u8[1024]{0}', space=vmem, size = 0x400, scoped, tag = 'output window, operand 0, single buffered']
    %7 = vsyncpa [#allocation3], 0
    %8 = vsyncpa [#allocation4], 0
    // Predicated region
    $region2: #{tpu_custom_call.1} parent=1 // pred_check
      _
    $region3: #{tpu_custom_call.1} parent=1 // pred_check_branch
      %10 = sbr.rel (0) target = $region5
    $region4: #{tpu_custom_call.1} parent=1 // pred_region
      %s12 = ssub.s32 256, 256
      %13 = vsyncadd [#allocation3], %s12
      %s14 = sshll.u32 [#allocation2], 4
      %s15 = int_to_ptr.vmem [resolvable:$true] %s14
      %20 = dma.hbm_to_vmem [thread:$0]  %s0, 256, %s15, [#allocation3], 128, 128, 8
    $region5: #{tpu_custom_call.1} parent=1 // pred_fallthru
      _
    // Predicated region
    $region6: #{tpu_custom_call.1} parent=1 // pred_check
      _
    $region7: #{tpu_custom_call.1} parent=1 // pred_check_branch
      %22 = sbr.rel (0) target = $region9
    $region8: #{tpu_custom_call.1} parent=1 // pred_region
      _
    $region9: #{tpu_custom_call.1} parent=1 // pred_fallthru
      _
    // Predicated region
    $region10: #{tpu_custom_call.1} parent=1 // pred_check
      _
    $region11: #{tpu_custom_call.1} parent=1 // pred_check_branch
      %24 = sbr.rel (0) target = $region13
    $region12: #{tpu_custom_call.1} parent=1 // pred_region
      %25 = dma.done [#allocation3], 256
    $region13: #{tpu_custom_call.1} parent=1 // pred_fallthru
      _
    %v26 = vld [vmem:[#allocation2] sm:$0xff]
    %v27 = vld [vmem:[#allocation2 + $0x8] sm:$0xff]
    %v28 = vld [vmem:[%s1] sm:$0x1]
    %v30 = vlaneseq
    %v31 = vshrl.u32 %v30, 7
    %v32 = vsub.s32 0, %v31
    %v33 = vrot.slane %v28, %v32
    %v35 = vmul.f32 %v26, %v33
    %v36 = vmul.f32 %v27, %v33
    %vm37 = vcmask 261120
    %v38 = vsel %vm37, %v35, 0.0
    %39 = vadd.xlane.f32.xlu0 %v38
    %v40 = vpop.xlane.xlu0 %39
    %v41 = vsel %vm37, %v36, 0.0
    %42 = vadd.xlane.f32.xlu0 %v41
    %v43 = vpop.xlane.xlu0 %42
    %v44 = vmax.f32 %v40, 0.0
    %v45 = vmax.f32 %v43, 0.0
    %v48 = vlaneseq
    %v49 = vand.u32 %v48, 127
    %v50 = vlaneseq
    %v51 = vshrl.u32 %v50, 7
    %v52 = vsub.s32 %v49, %v51
    %v53 = vrot.slane %v44, %v52
    %v54 = vlaneseq
    %v55 = vshrl.u32 %v54, 7
    %v56 = vsub.s32 %v49, %v55
    %v57 = vrot.slane %v45, %v56
    %vm58 = vcmask 1041409
    %v59 = vsel %vm58, %v57, %v53
    %vm61 = vcmask 58368
    %v62 = vsel %vm61, %v59, -inf
    %63 = vmax.xlane.f32.xlu0 %v62
    %v64 = vpop.xlane.xlu0 %63
    %v66 = vlaneseq
    %v67 = vshrl.u32 %v66, 7
    %v68 = vsub.s32 0, %v67
    %v69 = vrot.slane %v64, %v68
    %v70 = vlaneseq
    %v71 = vshrl.u32 %v70, 7
    %v72 = vsub.s32 1, %v71
    %v73 = vrot.slane %v64, %v72
    %v76 = vsub.f32 %v44, %v69
    %v77 = vsub.f32 %v45, %v73
    %v78 = vmul.f32 %v76, 1.442695
    %v79 = vpow.pop %v78
    %v80 = vmul.f32 %v77, 1.442695
    %v81 = vpow.pop %v80
    %84 = vset.pattern.permute.xlu0 0
    %85 = vperm.xlu0 %84, %v79
    %v86 = vpop.permute.xlu0 %85
    %87 = vset.pattern.permute.xlu0 0
    %88 = vperm.xlu0 %87, %v81
    %v89 = vpop.permute.xlu0 %88
    %v90 = vlaneseq
    %v91 = vshrl.u32 %v90, 7
    %v92 = vsub.s32 %v49, %v91
    %v93 = vrot.slane %v86, %v92
    %v94 = vlaneseq
    %v95 = vshrl.u32 %v94, 7
    %v96 = vsub.s32 %v49, %v95
    %v97 = vrot.slane %v89, %v96
    %v98 = vsel %vm58, %v97, %v93
    %v100 = vsel %vm61, %v98, 0.0
    %101 = vadd.xlane.f32.xlu0 %v100
    %v102 = vpop.xlane.xlu0 %101
    %v104 = vlaneseq
    %v105 = vshrl.u32 %v104, 7
    %v106 = vsub.s32 0, %v105
    %v107 = vrot.slane %v102, %v106
    %v108 = vlaneseq
    %v109 = vshrl.u32 %v108, 7
    %v110 = vsub.s32 1, %v109
    %v111 = vrot.slane %v102, %v110
    %v114 = vrcp.pop %v107
    %v115 = vmul.f32 %v79, %v114
    %v116 = vrcp.pop %v111
    %v117 = vmul.f32 %v81, %v116
    %119 = vset.pattern.permute.xlu0 0
    %120 = vperm.xlu0 %119, %v115
    %v121 = vpop.permute.xlu0 %120
    %124 = vset.pattern.permute.xlu0 0
    %125 = vperm.xlu0 %124, %v117
    %v126 = vpop.permute.xlu0 %125
    %v128 = vmul.f32 %v26, %v121
    %v129 = vmul.f32 %v27, %v126
    %v130 = vsel %vm37, %v128, 0.0
    %v131 = vrot.slane %v130, 4
    %v132 = vadd.f32 %v130, %v131
    %v133 = vrot.slane %v132, 2
    %v134 = vadd.f32 %v132, %v133
    %v135 = vrot.slane %v134, 1
    %v136 = vadd.f32 %v134, %v135
    %v137 = vsel %vm37, %v129, 0.0
    %v138 = vrot.slane %v137, 4
    %v139 = vadd.f32 %v137, %v138
    %v140 = vrot.slane %v139, 2
    %v141 = vadd.f32 %v139, %v140
    %v142 = vrot.slane %v141, 1
    %v143 = vadd.f32 %v141, %v142
    %v146 = vsel %vm58, %v143, %v136
    %vm148 = vcmask 254976
    %149 = vst.msk [vmem:[#allocation5] sm:$0x3] %vm148, %v146
    // Predicated region
    $region14: #{tpu_custom_call.1} parent=1 // pred_check
      _
    $region15: #{tpu_custom_call.1} parent=1 // pred_check_branch
      %151 = sbr.rel (0) target = $region17
    $region16: #{tpu_custom_call.1} parent=1 // pred_region
      %s153 = ssub.s32 32, 32
      %154 = vsyncadd [#allocation4], %s153
      %s156 = sshll.u32 [#allocation5], 4
      %s157 = int_to_ptr.vmem [resolvable:$true] %s156
      %159 = dma.vmem_to_hbm [thread:$0]  %s157, 32, %s2, [#allocation4]
    $region17: #{tpu_custom_call.1} parent=1 // pred_fallthru
      _
    // Predicated region
    $region18: #{tpu_custom_call.1} parent=1 // pred_check
      _
    $region19: #{tpu_custom_call.1} parent=1 // pred_check_branch
      %161 = sbr.rel (0) target = $region21
    $region20: #{tpu_custom_call.1} parent=1 // pred_region
      %162 = dma.done [#allocation4], 32
    $region21: #{tpu_custom_call.1} parent=1 // pred_fallthru
      _
    %163 = vsyncpa [#allocation3], 1
    %164 = vsyncpa [#allocation4], 1

</llo_original>
